<compile_context>
chip_gen: v7x
topology: tpu7x:2x2x1
jax: 0.10.0
libtpu: 0.0.40
codegen_flags: <defaults>
</compile_context>

<pallas_src>
import functools

import jax
import jax.numpy as jnp
from jax import lax
from jax.experimental import pallas as pl
from jax.experimental.pallas import tpu as pltpu


def surface_mlp_kernel(x_ref, w1_ref, b1_ref, w2_ref, b2_ref, w3_ref, b3_ref, o_ref, *, tc):
    """Fused MLP over one batch tile, feature-major layout, chunked along the lane axis.

    x_ref:  [in_dim,  TM]  f32    (batch on the 128-lane axis; cast to bf16 in-kernel)
    w*_ref: [out, in]      bf16   (PyTorch Linear layout -> compute W @ x)
    b*_ref: [out, 1]       f32
    o_ref:  [out_dim, TM]  f32
    """
    # Weights/biases are tiny; load once per grid step, reused by every chunk.
    w1 = w1_ref[...]
    b1 = b1_ref[...]
    w2 = w2_ref[...]
    b2 = b2_ref[...]
    w3 = w3_ref[...]
    b3 = b3_ref[...]

    tm = x_ref.shape[1]
    nc = tm // tc  # static

    def chunk(c, carry):
        off = pl.multiple_of(c * tc, tc)
        xc = x_ref[:, pl.ds(off, tc)].astype(jnp.bfloat16)         # bf16 [in, tc]

        # Layer 1: W1 @ x + b1, ReLU  (MXU bf16 -> f32 accumulate)
        h1 = jnp.dot(w1, xc, preferred_element_type=jnp.float32) + b1
        h1 = jnp.maximum(h1, 0.0).astype(jnp.bfloat16)             # bf16 inter-layer carry

        # Dropout(p=0.2): identity in inference mode.

        # Layer 2
        h2 = jnp.dot(w2, h1, preferred_element_type=jnp.float32) + b2
        h2 = jnp.maximum(h2, 0.0).astype(jnp.bfloat16)

        # Layer 3
        out = jnp.dot(w3, h2, preferred_element_type=jnp.float32) + b3
        o_ref[:, pl.ds(off, tc)] = out.astype(o_ref.dtype)
        return carry

    lax.fori_loop(0, nc, chunk, 0, unroll=True)


def surface_model_forward(x, params, tm=4096, tc=512):
    """x: [B, input_dim] float32; params: dict (bf16 weights [out,in], f32 biases [out,1])."""
    w1, b1 = params["w1"], params["b1"]
    w2, b2 = params["w2"], params["b2"]
    w3, b3 = params["w3"], params["b3"]

    B, in_dim = x.shape
    out_dim = w3.shape[0]

    # Batch tile: lane-dense multiple of 128, large by default to amortize per-step
    # overhead, capped so tiny batches aren't over-padded.
    tm = min(tm, 128 * pl.cdiv(B, 128))
    # If the whole batch collapsed into a single tile, split it so v7x's second
    # TensorCore gets work (one extra ~0.35 us step on 1-TC chips: negligible).
    if pl.cdiv(B, tm) == 1 and tm % 256 == 0:
        tm //= 2
    b_pad = tm * pl.cdiv(B, tm)
    num_tiles = b_pad // tm

    # Inner chunk width: largest of (tc, 512, 256, 128) dividing tm.
    tc = next(c for c in (tc, 512, 256, 128) if tm % c == 0)

    # Single wrapper-side layout pass: pad + transpose, still f32 (the bf16 cast is
    # done inside the kernel, so there is no separate HBM cast pass).
    x_t = jnp.pad(x, ((0, b_pad - B), (0, 0))).T                   # [in_dim, b_pad] f32

    const = lambda shape: pl.BlockSpec(shape, lambda i: (0, 0))

    kernel = functools.partial(surface_mlp_kernel, tc=tc)

    out_t = pl.pallas_call(
        kernel,
        out_shape=jax.ShapeDtypeStruct((out_dim, b_pad), jnp.float32),
        grid_spec=pltpu.PrefetchScalarGridSpec(
            num_scalar_prefetch=0,
            grid=(num_tiles,),
            in_specs=[
                pl.BlockSpec((in_dim, tm), lambda i: (0, i)),      # x tile (lane-dense)
                const(w1.shape), const(b1.shape),                  # weights VMEM-resident
                const(w2.shape), const(b2.shape),
                const(w3.shape), const(b3.shape),
            ],
            out_specs=pl.BlockSpec((out_dim, tm), lambda i: (0, i)),
        ),
        compiler_params=pltpu.CompilerParams(
            dimension_semantics=("parallel",),                     # v7x: shard batch across TCs
        ),
    )(x_t, w1, b1, w2, b2, w3, b3)

    # Consumers that accept feature-major [out_dim, B] can use out_t[:, :B] directly
    # and skip this transpose pass.
    return out_t.T[:B]                                             # [B, out_dim]


def init_params(key, input_dim=8, hidden_dim=64, out_dim=4):
    """Synthetic parameters in PyTorch Linear layout: W [out, in], b [out] (kept as [out, 1]).

    Weights are stored bf16 (HBM I/O dtype); biases stay f32 (added to f32 accumulators).
    """
    k1, k2, k3, k4, k5, k6 = jax.random.split(key, 6)
    s1 = 1.0 / jnp.sqrt(input_dim)
    s2 = 1.0 / jnp.sqrt(hidden_dim)
    return {
        "w1": jax.random.uniform(k1, (hidden_dim, input_dim), jnp.float32, -s1, s1).astype(jnp.bfloat16),
        "b1": jax.random.uniform(k2, (hidden_dim, 1), jnp.float32, -s1, s1),
        "w2": jax.random.uniform(k3, (hidden_dim, hidden_dim), jnp.float32, -s2, s2).astype(jnp.bfloat16),
        "b2": jax.random.uniform(k4, (hidden_dim, 1), jnp.float32, -s2, s2),
        "w3": jax.random.uniform(k5, (out_dim, hidden_dim), jnp.float32, -s2, s2).astype(jnp.bfloat16),
        "b3": jax.random.uniform(k6, (out_dim, 1), jnp.float32, -s2, s2),
    }


def reference_forward(x, params):
    """Pure-JAX reference mirroring the kernel's dtype handling (bf16 at matmul inputs)."""
    w1 = params["w1"].astype(jnp.float32)
    w2 = params["w2"].astype(jnp.float32)
    w3 = params["w3"].astype(jnp.float32)
    b1, b2, b3 = params["b1"].T, params["b2"].T, params["b3"].T

    xb = x.astype(jnp.bfloat16).astype(jnp.float32)
    h1 = jnp.maximum(xb @ w1.T + b1, 0.0)
    h1 = h1.astype(jnp.bfloat16).astype(jnp.float32)
    h2 = jnp.maximum(h1 @ w2.T + b2, 0.0)
    h2 = h2.astype(jnp.bfloat16).astype(jnp.float32)
    return h2 @ w3.T + b3


if __name__ == "__main__":
    key = jax.random.PRNGKey(0)
    k_param, k_x1, k_x2, k_x3 = jax.random.split(key, 4)

    INPUT_DIM, HIDDEN_DIM, OUT_DIM = 8, 64, 4
    params = init_params(k_param, input_dim=INPUT_DIM, hidden_dim=HIDDEN_DIM, out_dim=OUT_DIM)

    # Small inference-style batch (single 128-wide tile after padding).
    B1 = 8
    x1 = jax.random.normal(k_x1, (B1, INPUT_DIM), jnp.float32)
    out1 = jax.block_until_ready(surface_model_forward(x1, params))
    ref1 = reference_forward(x1, params)
    assert out1.shape == (B1, OUT_DIM), out1.shape
    assert jnp.allclose(out1, ref1, atol=1e-3, rtol=1e-3), "mismatch vs reference (B=8)"

    # Batch exercising the multi-chunk inner loop + tail padding path.
    B2 = 300
    x2 = jax.random.normal(k_x2, (B2, INPUT_DIM), jnp.float32)
    out2 = jax.block_until_ready(surface_model_forward(x2, params))
    ref2 = reference_forward(x2, params)
    assert out2.shape == (B2, OUT_DIM), out2.shape
    assert jnp.allclose(out2, ref2, atol=1e-3, rtol=1e-3), "mismatch vs reference (B=300)"

    # Medium batch exercising the two-tile (megacore-friendly) grid path.
    B3 = 1200
    x3 = jax.random.normal(k_x3, (B3, INPUT_DIM), jnp.float32)
    out3 = jax.block_until_ready(surface_model_forward(x3, params))
    ref3 = reference_forward(x3, params)
    assert out3.shape == (B3, OUT_DIM), out3.shape
    assert jnp.allclose(out3, ref3, atol=1e-3, rtol=1e-3), "mismatch vs reference (B=1200)"

    print("KERNEL_OK")
</pallas_src>

<mosaic_0001>
module attributes {stable_mosaic.version = 11 : i64} {
  func.func @surface_mlp_kernel(%arg0: i32, %arg1: memref<8x128xf32, #tpu.memory_space<vmem>>, %arg2: memref<64x8xbf16, #tpu.memory_space<vmem>>, %arg3: memref<64x1xf32, #tpu.memory_space<vmem>>, %arg4: memref<64x64xbf16, #tpu.memory_space<vmem>>, %arg5: memref<64x1xf32, #tpu.memory_space<vmem>>, %arg6: memref<4x64xbf16, #tpu.memory_space<vmem>>, %arg7: memref<4x1xf32, #tpu.memory_space<vmem>>, %arg8: memref<4x128xf32, #tpu.memory_space<vmem>>) attributes {dimension_semantics = [#tpu.dimension_semantics<parallel>], iteration_bounds = array<i64: 1>, scalar_prefetch = 0 : i64, scratch_operands = 0 : i64, tpu.core_type = #tpu.core_type<tc>, window_params = [{transform_indices = @transform_0, window_bounds = array<i64: 8, 128>}, {pipeline_mode = #tpu.pipeline_mode<synchronous>, transform_indices = @transform_1, window_bounds = array<i64: 64, 8>}, {pipeline_mode = #tpu.pipeline_mode<synchronous>, transform_indices = @transform_2, window_bounds = array<i64: 64, 1>}, {pipeline_mode = #tpu.pipeline_mode<synchronous>, transform_indices = @transform_3, window_bounds = array<i64: 64, 64>}, {pipeline_mode = #tpu.pipeline_mode<synchronous>, transform_indices = @transform_4, window_bounds = array<i64: 64, 1>}, {pipeline_mode = #tpu.pipeline_mode<synchronous>, transform_indices = @transform_5, window_bounds = array<i64: 4, 64>}, {pipeline_mode = #tpu.pipeline_mode<synchronous>, transform_indices = @transform_6, window_bounds = array<i64: 4, 1>}, {transform_indices = @transform_7, window_bounds = array<i64: 4, 128>}]} {
    %c0 = arith.constant 0 : index
    %c0_0 = arith.constant 0 : index
    %0 = vector.load %arg2[%c0, %c0_0] : memref<64x8xbf16, #tpu.memory_space<vmem>>, vector<64x8xbf16>
    %c0_1 = arith.constant 0 : index
    %c0_2 = arith.constant 0 : index
    %1 = vector.load %arg3[%c0_1, %c0_2] : memref<64x1xf32, #tpu.memory_space<vmem>>, vector<64x1xf32>
    %c0_3 = arith.constant 0 : index
    %c0_4 = arith.constant 0 : index
    %2 = vector.load %arg4[%c0_3, %c0_4] : memref<64x64xbf16, #tpu.memory_space<vmem>>, vector<64x64xbf16>
    %c0_5 = arith.constant 0 : index
    %c0_6 = arith.constant 0 : index
    %3 = vector.load %arg5[%c0_5, %c0_6] : memref<64x1xf32, #tpu.memory_space<vmem>>, vector<64x1xf32>
    %c0_7 = arith.constant 0 : index
    %c0_8 = arith.constant 0 : index
    %4 = vector.load %arg6[%c0_7, %c0_8] : memref<4x64xbf16, #tpu.memory_space<vmem>>, vector<4x64xbf16>
    %c0_9 = arith.constant 0 : index
    %c0_10 = arith.constant 0 : index
    %5 = vector.load %arg7[%c0_9, %c0_10] : memref<4x1xf32, #tpu.memory_space<vmem>>, vector<4x1xf32>
    %c0_i32 = arith.constant 0 : i32
    %c128_i32 = arith.constant 128 : i32
    %6 = arith.muli %c0_i32, %c128_i32 : i32
    %7 = tpu.assume_multiple %6, 128 : i32
    %c0_11 = arith.constant 0 : index
    %8 = arith.index_cast %7 : i32 to index
    %9 = vector.load %arg1[%c0_11, %8] : memref<8x128xf32, #tpu.memory_space<vmem>>, vector<8x128xf32>
    %10 = arith.truncf %9 : vector<8x128xf32> to vector<8x128xbf16>
    %cst = arith.constant dense<0.000000e+00> : vector<64x128xf32>
    %11 = tpu.matmul %0, %10, %cst {dimension_numbers = #tpu.dot_dimension_numbers<[1], [0], [0], [1], [0, 0, 1, 1], [], []>} : vector<64x8xbf16>, vector<8x128xbf16>, vector<64x128xf32> -> vector<64x128xf32>
    %12 = vector.broadcast %1 : vector<64x1xf32> to vector<64x128xf32>
    %13 = arith.addf %11, %12 : vector<64x128xf32>
    %cst_12 = arith.constant 0.000000e+00 : f32
    %14 = vector.broadcast %cst_12 : f32 to vector<64x128xf32>
    %15 = arith.maximumf %13, %14 : vector<64x128xf32>
    %16 = arith.truncf %15 : vector<64x128xf32> to vector<64x128xbf16>
    %cst_13 = arith.constant dense<0.000000e+00> : vector<64x128xf32>
    %17 = tpu.matmul %2, %16, %cst_13 {dimension_numbers = #tpu.dot_dimension_numbers<[1], [0], [0], [1], [0, 0, 1, 1], [], []>} : vector<64x64xbf16>, vector<64x128xbf16>, vector<64x128xf32> -> vector<64x128xf32>
    %18 = vector.broadcast %3 : vector<64x1xf32> to vector<64x128xf32>
    %19 = arith.addf %17, %18 : vector<64x128xf32>
    %cst_14 = arith.constant 0.000000e+00 : f32
    %20 = vector.broadcast %cst_14 : f32 to vector<64x128xf32>
    %21 = arith.maximumf %19, %20 : vector<64x128xf32>
    %22 = arith.truncf %21 : vector<64x128xf32> to vector<64x128xbf16>
    %cst_15 = arith.constant dense<0.000000e+00> : vector<4x128xf32>
    %23 = tpu.matmul %4, %22, %cst_15 {dimension_numbers = #tpu.dot_dimension_numbers<[1], [0], [0], [1], [0, 0, 1, 1], [], []>} : vector<4x64xbf16>, vector<64x128xbf16>, vector<4x128xf32> -> vector<4x128xf32>
    %24 = vector.broadcast %5 : vector<4x1xf32> to vector<4x128xf32>
    %25 = arith.addf %23, %24 : vector<4x128xf32>
    %c0_16 = arith.constant 0 : index
    %26 = arith.index_cast %7 : i32 to index
    %27 = vector.load %arg8[%c0_16, %26] : memref<4x128xf32, #tpu.memory_space<vmem>>, vector<4x128xf32>
    tpu.vector_store %arg8[%c0_16, %26], %25 {strides = array<i32>} : memref<4x128xf32, #tpu.memory_space<vmem>>, vector<4x128xf32>,
    %c1_i32 = arith.constant 1 : i32
    return
  }
  func.func @transform_0(%arg0: i32) -> (i32, i32) {
    %c0_i32 = arith.constant 0 : i32
    %c0_i32_0 = arith.constant 0 : i32
    return %c0_i32, %arg0 : i32, i32
  }
  func.func @transform_1(%arg0: i32) -> (i32, i32) {
    %c0_i32 = arith.constant 0 : i32
    %c0_i32_0 = arith.constant 0 : i32
    %c0_i32_1 = arith.constant 0 : i32
    return %c0_i32, %c0_i32_0 : i32, i32
  }
  func.func @transform_2(%arg0: i32) -> (i32, i32) {
    %c0_i32 = arith.constant 0 : i32
    %c0_i32_0 = arith.constant 0 : i32
    %c0_i32_1 = arith.constant 0 : i32
    return %c0_i32, %c0_i32_0 : i32, i32
  }
  func.func @transform_3(%arg0: i32) -> (i32, i32) {
    %c0_i32 = arith.constant 0 : i32
    %c0_i32_0 = arith.constant 0 : i32
    %c0_i32_1 = arith.constant 0 : i32
    return %c0_i32, %c0_i32_0 : i32, i32
  }
  func.func @transform_4(%arg0: i32) -> (i32, i32) {
    %c0_i32 = arith.constant 0 : i32
    %c0_i32_0 = arith.constant 0 : i32
    %c0_i32_1 = arith.constant 0 : i32
    return %c0_i32, %c0_i32_0 : i32, i32
  }
  func.func @transform_5(%arg0: i32) -> (i32, i32) {
    %c0_i32 = arith.constant 0 : i32
    %c0_i32_0 = arith.constant 0 : i32
    %c0_i32_1 = arith.constant 0 : i32
    return %c0_i32, %c0_i32_0 : i32, i32
  }
  func.func @transform_6(%arg0: i32) -> (i32, i32) {
    %c0_i32 = arith.constant 0 : i32
    %c0_i32_0 = arith.constant 0 : i32
    %c0_i32_1 = arith.constant 0 : i32
    return %c0_i32, %c0_i32_0 : i32, i32
  }
  func.func @transform_7(%arg0: i32) -> (i32, i32) {
    %c0_i32 = arith.constant 0 : i32
    %c0_i32_0 = arith.constant 0 : i32
    return %c0_i32, %arg0 : i32, i32
  }
}

</mosaic_0001>

<llo_original>
// kernel: tpu_custom_call.1
$region0: #{tpu_custom_call.1}
  #allocation0 [shape = 'u32[]', space=smem, size = 0x4, offset = 0x4, fixed_abs, tag = 'smem constant byte address 0x4 - core index']
  #allocation1 [shape = 'u32[144,128]{1,0:T(1,128)}', space=vmem, size = 0x12000, scoped, tag = 'internal scratch']
  %s0 = inlined_call_operand.vmem [shape: f32[8,128], index: 0, kind: input, shape index: {}]
  %s1 = inlined_call_operand.vmem [shape: bf16[64,8], index: 1, kind: input, shape index: {}]
  %s2 = inlined_call_operand.vmem [shape: f32[64,1], index: 2, kind: input, shape index: {}]
  %s3 = inlined_call_operand.vmem [shape: bf16[64,64], index: 3, kind: input, shape index: {}]
  %s4 = inlined_call_operand.vmem [shape: f32[64,1], index: 4, kind: input, shape index: {}]
  %s5 = inlined_call_operand.vmem [shape: bf16[4,64], index: 5, kind: input, shape index: {}]
  %s6 = inlined_call_operand.vmem [shape: f32[4,1], index: 6, kind: input, shape index: {}]
  %s7 = inlined_call_operand.hbm [shape: f32[4,128], index: 7, kind: output, shape index: {}]
  %s8 = sld [smem:[#allocation0]]
  $region38: #{tpu_custom_call.1} parent=0
    _
  %s10 = ssub.s32 1, %s8
  %s11 = scalar_select 0, %s10, %s8
  $region1: #{tpu_custom_call.1} parent=0
    #allocation2 [shape = 'u8[2048]{0}', space=vmem, size = 0x800, scoped, tag = 'output window, operand 0, single buffered']
    #allocation3 [shape = 's32[1]{0}', space=sflag, size = 0x4, scoped, tag = 'scoped memory for tpu_custom_call.1']
    %12 = vsyncpa [#allocation3], 0
    // Predicated region
    $region2: #{tpu_custom_call.1} parent=1 // pred_check
      _
    $region3: #{tpu_custom_call.1} parent=1 // pred_check_branch
      %14 = sbr.rel (0) target = $region5
    $region4: #{tpu_custom_call.1} parent=1 // pred_region
      _
    $region5: #{tpu_custom_call.1} parent=1 // pred_fallthru
      _
    // Predicated region
    $region6: #{tpu_custom_call.1} parent=1 // pred_check
      _
    $region7: #{tpu_custom_call.1} parent=1 // pred_check_branch
      %16 = sbr.rel (0) target = $region9
    $region8: #{tpu_custom_call.1} parent=1 // pred_region
      _
    $region9: #{tpu_custom_call.1} parent=1 // pred_fallthru
      _
    // Predicated region
    $region10: #{tpu_custom_call.1} parent=1 // pred_check
      _
    $region11: #{tpu_custom_call.1} parent=1 // pred_check_branch
      %18 = sbr.rel (0) target = $region13
    $region12: #{tpu_custom_call.1} parent=1 // pred_region
      _
    $region13: #{tpu_custom_call.1} parent=1 // pred_fallthru
      _
    // Predicated region
    $region14: #{tpu_custom_call.1} parent=1 // pred_check
      _
    $region15: #{tpu_custom_call.1} parent=1 // pred_check_branch
      %20 = sbr.rel (0) target = $region17
    $region16: #{tpu_custom_call.1} parent=1 // pred_region
      _
    $region17: #{tpu_custom_call.1} parent=1 // pred_fallthru
      _
    // Predicated region
    $region18: #{tpu_custom_call.1} parent=1 // pred_check
      _
    $region19: #{tpu_custom_call.1} parent=1 // pred_check_branch
      %22 = sbr.rel (0) target = $region21
    $region20: #{tpu_custom_call.1} parent=1 // pred_region
      _
    $region21: #{tpu_custom_call.1} parent=1 // pred_fallthru
      _
    // Predicated region
    $region22: #{tpu_custom_call.1} parent=1 // pred_check
      _
    $region23: #{tpu_custom_call.1} parent=1 // pred_check_branch
      %24 = sbr.rel (0) target = $region25
    $region24: #{tpu_custom_call.1} parent=1 // pred_region
      _
    $region25: #{tpu_custom_call.1} parent=1 // pred_fallthru
      _
    // Predicated region
    $region26: #{tpu_custom_call.1} parent=1 // pred_check
      _
    $region27: #{tpu_custom_call.1} parent=1 // pred_check_branch
      %26 = sbr.rel (0) target = $region29
    $region28: #{tpu_custom_call.1} parent=1 // pred_region
      _
    $region29: #{tpu_custom_call.1} parent=1 // pred_fallthru
      _
    %v28 = vld [vmem:[%s1] sm:$0xf]
    %v29 = vld [vmem:[%s1 + $0x4] sm:$0xf]
    %v30 = vld [vmem:[%s1 + $0x8] sm:$0xf]
    %v31 = vld [vmem:[%s1 + $0xc] sm:$0xf]
    %v32 = vld [vmem:[%s1 + $0x10] sm:$0xf]
    %v33 = vld [vmem:[%s1 + $0x14] sm:$0xf]
    %v34 = vld [vmem:[%s1 + $0x18] sm:$0xf]
    %v35 = vld [vmem:[%s1 + $0x1c] sm:$0xf]
    %v36 = vld [vmem:[%s2] sm:$0xff]
    %v37 = vld [vmem:[%s2 + $0x8] sm:$0xff]
    %v38 = vld [vmem:[%s2 + $0x10] sm:$0xff]
    %v39 = vld [vmem:[%s2 + $0x18] sm:$0xff]
    %v40 = vld [vmem:[%s2 + $0x20] sm:$0xff]
    %v41 = vld [vmem:[%s2 + $0x28] sm:$0xff]
    %v42 = vld [vmem:[%s2 + $0x30] sm:$0xff]
    %v43 = vld [vmem:[%s2 + $0x38] sm:$0xff]
    %v44 = vld [vmem:[%s3] sm:$0xf]
    %v45 = vld [vmem:[%s3 + $0x4] sm:$0xf]
    %v46 = vld [vmem:[%s3 + $0x8] sm:$0xf]
    %v47 = vld [vmem:[%s3 + $0xc] sm:$0xf]
    %v48 = vld [vmem:[%s3 + $0x10] sm:$0xf]
    %v49 = vld [vmem:[%s3 + $0x14] sm:$0xf]
    %v50 = vld [vmem:[%s3 + $0x18] sm:$0xf]
    %v51 = vld [vmem:[%s3 + $0x1c] sm:$0xf]
    %v52 = vld [vmem:[%s4] sm:$0xff]
    %v53 = vld [vmem:[%s4 + $0x8] sm:$0xff]
    %v54 = vld [vmem:[%s4 + $0x10] sm:$0xff]
    %v55 = vld [vmem:[%s4 + $0x18] sm:$0xff]
    %v56 = vld [vmem:[%s4 + $0x20] sm:$0xff]
    %v57 = vld [vmem:[%s4 + $0x28] sm:$0xff]
    %v58 = vld [vmem:[%s4 + $0x30] sm:$0xff]
    %v59 = vld [vmem:[%s4 + $0x38] sm:$0xff]
    %v60 = vld [vmem:[%s5] sm:$0x3]
    %v61 = vld [vmem:[%s6] sm:$0xf]
    %v62 = vld [vmem:[%s0] sm:$0xff]
    %v63 = vpack.c.bf16 %v62, %v62
    %65 = vset.pattern.permute.xlu0 0
    %66 = vperm.xlu0 %65, %v36
    %v67 = vpop.permute.xlu0 %66
    %70 = vset.pattern.permute.xlu0 0
    %71 = vperm.xlu0 %70, %v37
    %v72 = vpop.permute.xlu0 %71
    %75 = vset.pattern.permute.xlu0 0
    %76 = vperm.xlu0 %75, %v38
    %v77 = vpop.permute.xlu0 %76
    %80 = vset.pattern.permute.xlu0 0
    %81 = vperm.xlu0 %80, %v39
    %v82 = vpop.permute.xlu0 %81
    %85 = vset.pattern.permute.xlu0 0
    %86 = vperm.xlu0 %85, %v40
    %v87 = vpop.permute.xlu0 %86
    %90 = vset.pattern.permute.xlu0 0
    %91 = vperm.xlu0 %90, %v41
    %v92 = vpop.permute.xlu0 %91
    %95 = vset.pattern.permute.xlu0 0
    %96 = vperm.xlu0 %95, %v42
    %v97 = vpop.permute.xlu0 %96
    %100 = vset.pattern.permute.xlu0 0
    %101 = vperm.xlu0 %100, %v43
    %v102 = vpop.permute.xlu0 %101
    %v112 = vunpack.c.l.b16 %v28
    %v113 = vunpack.c.l.b16 %v29
    %v114 = vunpack.c.l.b16 %v30
    %v115 = vunpack.c.l.b16 %v31
    %v116 = vunpack.c.l.b16 %v32
    %v117 = vunpack.c.l.b16 %v33
    %v118 = vunpack.c.l.b16 %v34
    %v119 = vunpack.c.l.b16 %v35
    %v120 = vpack.c.b16 %v113, %v112
    %v121 = vpack.c.b16 %v115, %v114
    %v122 = vpack.c.b16 %v117, %v116
    %v123 = vpack.c.b16 %v119, %v118
    %vm124 = vcmask 64512
    %v126 = vsel %vm124, %v120, 0
    %v129 = vsel %vm124, %v121, 0
    %v132 = vsel %vm124, %v122, 0
    %v135 = vsel %vm124, %v123, 0
    %vm137 = vcmask 1043456
    %v139 = vsel %vm137, %v63, 0
    %141 = vmatprep.subr.bf16.mxu0 0
    %142 = vmatpush1.bf16.msra.mxu0 %v139
    %143 = vmatprep.subr.bf16.mxu0 0
    %144 = vmatpush1.bf16.msra.mxu0 0
    %145 = vmatprep.subr.bf16.mxu0 0
    %146 = vmatpush1.bf16.msra.mxu0 0
    %147 = vmatprep.subr.bf16.mxu0 0
    %148 = vmatpush1.bf16.msra.mxu0 0
    %149 = vmatprep.subr.bf16.mxu0 0
    %150 = vmatpush1.bf16.msra.mxu0 0
    %151 = vmatprep.subr.bf16.mxu0 0
    %152 = vmatpush1.bf16.msra.mxu0 0
    %153 = vmatprep.subr.bf16.mxu0 0
    %154 = vmatpush1.bf16.msra.mxu0 0
    %155 = vmatprep.subr.bf16.mxu0 0
    %156 = vmatpush1.bf16.msra.mxu0 0
    %157 = vmatprep.subr.bf16.mxu0 0
    %158 = vmatpush1.bf16.msra.mxu0 0
    %159 = vmatprep.subr.bf16.mxu0 0
    %160 = vmatpush1.bf16.msra.mxu0 0
    %161 = vmatprep.subr.bf16.mxu0 0
    %162 = vmatpush1.bf16.msra.mxu0 0
    %163 = vmatprep.subr.bf16.mxu0 0
    %164 = vmatpush1.bf16.msra.mxu0 0
    %165 = vmatprep.subr.bf16.mxu0 0
    %166 = vmatpush1.bf16.msra.mxu0 0
    %167 = vmatprep.subr.bf16.mxu0 0
    %168 = vmatpush1.bf16.msra.mxu0 0
    %169 = vmatprep.subr.bf16.mxu0 0
    %170 = vmatpush1.bf16.msra.mxu0 0
    %171 = vmatprep.subr.bf16.mxu0 0
    %172 = vmatpush1.bf16.msra.mxu0 0
    %173 = vmatprep.mubr.bf16.mxu0 0
    %174 = vmatmul.mubr.bf16.gmra.mrb[0].mxu0 %v126
    %v175 = vpop.f32.mrb[0].mxu0
    %v176 = vadd.f32 %v67, %v175
    %v177 = vpop.f32.mrb[0].mxu0
    %v178 = vpop.f32.mrb[0].mxu0
    %v179 = vadd.f32 %v72, %v178
    %v180 = vpop.f32.mrb[0].mxu0
    %181 = vmatprep.mubr.bf16.mxu0 0
    %182 = vmatmul.mubr.bf16.gmra.mrb[0].mxu0 %v129
    %v183 = vpop.f32.mrb[0].mxu0
    %v184 = vadd.f32 %v77, %v183
    %v185 = vpop.f32.mrb[0].mxu0
    %v186 = vpop.f32.mrb[0].mxu0
    %v187 = vadd.f32 %v82, %v186
    %v188 = vpop.f32.mrb[0].mxu0
    %189 = vmatprep.mubr.bf16.mxu0 0
    %190 = vmatmul.mubr.bf16.gmra.mrb[0].mxu0 %v132
    %v191 = vpop.f32.mrb[0].mxu0
    %v192 = vadd.f32 %v87, %v191
    %v193 = vpop.f32.mrb[0].mxu0
    %v194 = vpop.f32.mrb[0].mxu0
    %v195 = vadd.f32 %v92, %v194
    %v196 = vpop.f32.mrb[0].mxu0
    %197 = vmatprep.mubr.bf16.mxu0 0
    %198 = vmatmul.mubr.bf16.gmra.mrb[0].mxu0 %v135
    %v199 = vpop.f32.mrb[0].mxu0
    %v200 = vadd.f32 %v97, %v199
    %v201 = vpop.f32.mrb[0].mxu0
    %v202 = vpop.f32.mrb[0].mxu0
    %v203 = vadd.f32 %v102, %v202
    %v204 = vpop.f32.mrb[0].mxu0
    %205 = vdwg.mxu0
    %v206 = vmax.f32 %v176, 0.0
    %v207 = vmax.f32 %v179, 0.0
    %v208 = vmax.f32 %v184, 0.0
    %v209 = vmax.f32 %v187, 0.0
    %v210 = vmax.f32 %v192, 0.0
    %v211 = vmax.f32 %v195, 0.0
    %v212 = vmax.f32 %v200, 0.0
    %v213 = vmax.f32 %v203, 0.0
    %v214 = vpack.c.bf16 %v207, %v206
    %v215 = vpack.c.bf16 %v209, %v208
    %v216 = vpack.c.bf16 %v211, %v210
    %v217 = vpack.c.bf16 %v213, %v212
    %219 = vset.pattern.permute.xlu0 0
    %220 = vperm.xlu0 %219, %v52
    %v221 = vpop.permute.xlu0 %220
    %224 = vset.pattern.permute.xlu0 0
    %225 = vperm.xlu0 %224, %v53
    %v226 = vpop.permute.xlu0 %225
    %229 = vset.pattern.permute.xlu0 0
    %230 = vperm.xlu0 %229, %v54
    %v231 = vpop.permute.xlu0 %230
    %234 = vset.pattern.permute.xlu0 0
    %235 = vperm.xlu0 %234, %v55
    %v236 = vpop.permute.xlu0 %235
    %239 = vset.pattern.permute.xlu0 0
    %240 = vperm.xlu0 %239, %v56
    %v241 = vpop.permute.xlu0 %240
    %244 = vset.pattern.permute.xlu0 0
    %245 = vperm.xlu0 %244, %v57
    %v246 = vpop.permute.xlu0 %245
    %249 = vset.pattern.permute.xlu0 0
    %250 = vperm.xlu0 %249, %v58
    %v251 = vpop.permute.xlu0 %250
    %254 = vset.pattern.permute.xlu0 0
    %255 = vperm.xlu0 %254, %v59
    %v256 = vpop.permute.xlu0 %255
    %v266 = vunpack.c.l.b16 %v44
    %v267 = vunpack.c.l.b16 %v45
    %v268 = vunpack.c.l.b16 %v46
    %v269 = vunpack.c.l.b16 %v47
    %v270 = vunpack.c.l.b16 %v48
    %v271 = vunpack.c.l.b16 %v49
    %v272 = vunpack.c.l.b16 %v50
    %v273 = vunpack.c.l.b16 %v51
    %v274 = vpack.c.b16 %v267, %v266
    %v275 = vpack.c.b16 %v269, %v268
    %v276 = vpack.c.b16 %v271, %v270
    %v277 = vpack.c.b16 %v273, %v272
    %vm278 = vcmask 523264
    %v280 = vsel %vm278, %v274, 0
    %v283 = vsel %vm278, %v275, 0
    %v286 = vsel %vm278, %v276, 0
    %v289 = vsel %vm278, %v277, 0
    %291 = vmatprep.subr.bf16.mxu0 0
    %292 = vmatpush1.bf16.msra.mxu0 %v214
    %293 = vmatprep.subr.bf16.mxu0 0
    %294 = vmatpush1.bf16.msra.mxu0 %v215
    %295 = vmatprep.subr.bf16.mxu0 0
    %296 = vmatpush1.bf16.msra.mxu0 %v216
    %297 = vmatprep.subr.bf16.mxu0 0
    %298 = vmatpush1.bf16.msra.mxu0 %v217
    %299 = vmatprep.subr.bf16.mxu0 0
    %300 = vmatpush1.bf16.msra.mxu0 0
    %301 = vmatprep.subr.bf16.mxu0 0
    %302 = vmatpush1.bf16.msra.mxu0 0
    %303 = vmatprep.subr.bf16.mxu0 0
    %304 = vmatpush1.bf16.msra.mxu0 0
    %305 = vmatprep.subr.bf16.mxu0 0
    %306 = vmatpush1.bf16.msra.mxu0 0
    %307 = vmatprep.subr.bf16.mxu0 0
    %308 = vmatpush1.bf16.msra.mxu0 0
    %309 = vmatprep.subr.bf16.mxu0 0
    %310 = vmatpush1.bf16.msra.mxu0 0
    %311 = vmatprep.subr.bf16.mxu0 0
    %312 = vmatpush1.bf16.msra.mxu0 0
    %313 = vmatprep.subr.bf16.mxu0 0
    %314 = vmatpush1.bf16.msra.mxu0 0
    %315 = vmatprep.subr.bf16.mxu0 0
    %316 = vmatpush1.bf16.msra.mxu0 0
    %317 = vmatprep.subr.bf16.mxu0 0
    %318 = vmatpush1.bf16.msra.mxu0 0
    %319 = vmatprep.subr.bf16.mxu0 0
    %320 = vmatpush1.bf16.msra.mxu0 0
    %321 = vmatprep.subr.bf16.mxu0 0
    %322 = vmatpush1.bf16.msra.mxu0 0
    %323 = vmatprep.mubr.bf16.mxu0 0
    %324 = vmatmul.mubr.bf16.gmra.mrb[0].mxu0 %v280
    %v325 = vpop.f32.mrb[0].mxu0
    %v326 = vadd.f32 %v221, %v325
    %v327 = vpop.f32.mrb[0].mxu0
    %v328 = vpop.f32.mrb[0].mxu0
    %v329 = vadd.f32 %v226, %v328
    %v330 = vpop.f32.mrb[0].mxu0
    %331 = vmatprep.mubr.bf16.mxu0 0
    %332 = vmatmul.mubr.bf16.gmra.mrb[0].mxu0 %v283
    %v333 = vpop.f32.mrb[0].mxu0
    %v334 = vadd.f32 %v231, %v333
    %v335 = vpop.f32.mrb[0].mxu0
    %v336 = vpop.f32.mrb[0].mxu0
    %v337 = vadd.f32 %v236, %v336
    %v338 = vpop.f32.mrb[0].mxu0
    %339 = vmatprep.mubr.bf16.mxu0 0
    %340 = vmatmul.mubr.bf16.gmra.mrb[0].mxu0 %v286
    %v341 = vpop.f32.mrb[0].mxu0
    %v342 = vadd.f32 %v241, %v341
    %v343 = vpop.f32.mrb[0].mxu0
    %v344 = vpop.f32.mrb[0].mxu0
    %v345 = vadd.f32 %v246, %v344
    %v346 = vpop.f32.mrb[0].mxu0
    %347 = vmatprep.mubr.bf16.mxu0 0
    %348 = vmatmul.mubr.bf16.gmra.mrb[0].mxu0 %v289
    %v349 = vpop.f32.mrb[0].mxu0
    %v350 = vadd.f32 %v251, %v349
    %v351 = vpop.f32.mrb[0].mxu0
    %v352 = vpop.f32.mrb[0].mxu0
    %v353 = vadd.f32 %v256, %v352
    %v354 = vpop.f32.mrb[0].mxu0
    %355 = vdwg.mxu0
    %v356 = vmax.f32 %v326, 0.0
    %v357 = vmax.f32 %v329, 0.0
    %v358 = vmax.f32 %v334, 0.0
    %v359 = vmax.f32 %v337, 0.0
    %v360 = vmax.f32 %v342, 0.0
    %v361 = vmax.f32 %v345, 0.0
    %v362 = vmax.f32 %v350, 0.0
    %v363 = vmax.f32 %v353, 0.0
    %v364 = vpack.c.bf16 %v357, %v356
    %v365 = vpack.c.bf16 %v359, %v358
    %v366 = vpack.c.bf16 %v361, %v360
    %v367 = vpack.c.bf16 %v363, %v362
    %369 = vset.pattern.permute.xlu0 0
    %370 = vperm.xlu0 %369, %v61
    %v371 = vpop.permute.xlu0 %370
    %v374 = vsel %vm278, %v60, 0
    %376 = vmatprep.subr.bf16.mxu0 0
    %377 = vmatpush1.bf16.msra.mxu0 %v364
    %378 = vmatprep.subr.bf16.mxu0 0
    %379 = vmatpush1.bf16.msra.mxu0 %v365
    %380 = vmatprep.subr.bf16.mxu0 0
    %381 = vmatpush1.bf16.msra.mxu0 %v366
    %382 = vmatprep.subr.bf16.mxu0 0
    %383 = vmatpush1.bf16.msra.mxu0 %v367
    %384 = vmatprep.subr.bf16.mxu0 0
    %385 = vmatpush1.bf16.msra.mxu0 0
    %386 = vmatprep.subr.bf16.mxu0 0
    %387 = vmatpush1.bf16.msra.mxu0 0
    %388 = vmatprep.subr.bf16.mxu0 0
    %389 = vmatpush1.bf16.msra.mxu0 0
    %390 = vmatprep.subr.bf16.mxu0 0
    %391 = vmatpush1.bf16.msra.mxu0 0
    %392 = vmatprep.subr.bf16.mxu0 0
    %393 = vmatpush1.bf16.msra.mxu0 0
    %394 = vmatprep.subr.bf16.mxu0 0
    %395 = vmatpush1.bf16.msra.mxu0 0
    %396 = vmatprep.subr.bf16.mxu0 0
    %397 = vmatpush1.bf16.msra.mxu0 0
    %398 = vmatprep.subr.bf16.mxu0 0
    %399 = vmatpush1.bf16.msra.mxu0 0
    %400 = vmatprep.subr.bf16.mxu0 0
    %401 = vmatpush1.bf16.msra.mxu0 0
    %402 = vmatprep.subr.bf16.mxu0 0
    %403 = vmatpush1.bf16.msra.mxu0 0
    %404 = vmatprep.subr.bf16.mxu0 0
    %405 = vmatpush1.bf16.msra.mxu0 0
    %406 = vmatprep.subr.bf16.mxu0 0
    %407 = vmatpush1.bf16.msra.mxu0 0
    %408 = vmatprep.mubr.bf16.mxu0 0
    %409 = vmatmul.mubr.bf16.gmra.mrb[0].mxu0 %v374
    %v410 = vpop.f32.mrb[0].mxu0
    %v411 = vadd.f32 %v371, %v410
    %v412 = vpop.f32.mrb[0].mxu0
    %v413 = vpop.f32.mrb[0].mxu0
    %v414 = vpop.f32.mrb[0].mxu0
    %415 = vdwg.mxu0
    %416 = vst [vmem:[#allocation2] sm:$0xf] %v411
    // Predicated region
    $region30: #{tpu_custom_call.1} parent=1 // pred_check
      _
    $region31: #{tpu_custom_call.1} parent=1 // pred_check_branch
      %418 = sbr.rel (0) target = $region33
    $region32: #{tpu_custom_call.1} parent=1 // pred_region
      %s420 = ssub.s32 64, 64
      %421 = vsyncadd [#allocation3], %s420
      %s423 = sshll.u32 [#allocation2], 4
      %s424 = int_to_ptr.vmem [resolvable:$true] %s423
      %426 = dma.vmem_to_hbm [thread:$0]  %s424, 64, %s7, [#allocation3]
    $region33: #{tpu_custom_call.1} parent=1 // pred_fallthru
      _
    // Predicated region
    $region34: #{tpu_custom_call.1} parent=1 // pred_check
      _
    $region35: #{tpu_custom_call.1} parent=1 // pred_check_branch
      %428 = sbr.rel (0) target = $region37
    $region36: #{tpu_custom_call.1} parent=1 // pred_region
      %429 = dma.done [#allocation3], 64
    $region37: #{tpu_custom_call.1} parent=1 // pred_fallthru
      _
    %430 = vsyncpa [#allocation3], 1

</llo_original>
